<compile_context>
chip_gen: v5e
topology: v5e:2x2
jax: 0.10.0
libtpu: 0.0.40
codegen_flags: <defaults>
</compile_context>

<pallas_src>
import functools
import math

import jax
import jax.numpy as jnp
from jax.experimental import pallas as pl
from jax.experimental.pallas import tpu as pltpu


# ---------------------------------------------------------------------------
# Kernel
# ---------------------------------------------------------------------------
def _pe_add_kernel(x_ref, pe_ref, o_ref, *, reps: int):
    # x_ref : (rows, reps * D) block in VMEM  (flattened batch*d_model lanes)
    # pe_ref: (rows, D)        block in VMEM  (resident across inner grid axis)
    pe = pe_ref[...]
    if reps > 1:
        pe = jnp.tile(pe, (1, reps))        # broadcast over batch along lanes
    o_ref[...] = x_ref[...] + pe


# ---------------------------------------------------------------------------
# pe buffer, identical to the PyTorch __init__
# ---------------------------------------------------------------------------
def make_positional_encoding_buffer(d_model: int, seq_length: int,
                                    dtype=jnp.float32) -> jnp.ndarray:
    assert d_model % 2 == 0, "d_model must be even (same constraint as PyTorch recipe)"
    position = jnp.arange(seq_length, dtype=jnp.float32)[:, None]          # (S, 1)
    div_term = jnp.exp(
        jnp.arange(0, d_model, 2, dtype=jnp.float32)
        * (-math.log(10000.0) / d_model))                                  # (D/2,)
    pe = jnp.zeros((seq_length, 1, d_model), dtype=jnp.float32)
    pe = pe.at[:, 0, 0::2].set(jnp.sin(position * div_term))
    pe = pe.at[:, 0, 1::2].set(jnp.cos(position * div_term))
    return pe.astype(dtype)


# ---------------------------------------------------------------------------
# Tile-size selection (HBM-bandwidth-bound elementwise op)
#   Budget: ~4 MiB per x tile -> with double buffering of x/out/pe the kernel
#   stays well under the 32 MiB VMEM limit set below (safe on v5e/v6e/v7x).
# ---------------------------------------------------------------------------
_TARGET_X_BLOCK_BYTES = 4 * 1024 * 1024
_MAX_BLOCK_COLS = 8192


def _choose_col_block(N: int, D: int, itemsize: int) -> int:
    """Columns per block: multiple of D (pe alignment) and of 128 (lane rule),
    dividing N exactly; falls back to the full axis."""
    if N <= _MAX_BLOCK_COLS:
        return N
    step = (D * 128) // math.gcd(D, 128)
    if step > _MAX_BLOCK_COLS:
        return N
    cols = (_MAX_BLOCK_COLS // step) * step
    while cols >= step:
        if N % cols == 0:
            return cols
        cols -= step
    return N


def _choose_row_block(S: int, cols: int, itemsize: int) -> int:
    rows = _TARGET_X_BLOCK_BYTES // max(1, cols * itemsize)
    rows = max(8, (rows // 8) * 8)          # sublane rule: multiple of 8
    return S if rows >= S else rows         # full axis is always legal


# ---------------------------------------------------------------------------
# Forward
# ---------------------------------------------------------------------------
def positional_encoding_forward(x: jnp.ndarray, pe: jnp.ndarray) -> jnp.ndarray:
    """x: (seq, batch, d_model); pe: (seq_length, 1, d_model), seq <= seq_length."""
    S, B, D = x.shape
    assert pe.shape[0] >= S and pe.shape[-1] == D
    N = B * D
    itemsize = jnp.dtype(x.dtype).itemsize

    # Lane-dense, layout-preserving views.
    x_2d = x.reshape(S, N)                              # row-major: col = b*D + d
    pe_2d = pe[:S].reshape(S, D).astype(x.dtype)        # matches self.pe[:x.size(0)]

    cols = _choose_col_block(N, D, itemsize)            # multiple of D
    rows = _choose_row_block(S, cols, itemsize)
    reps = cols // D
    grid = (pl.cdiv(S, rows), N // cols)                # seq outer, batch inner

    out_2d = pl.pallas_call(
        functools.partial(_pe_add_kernel, reps=reps),
        out_shape=jax.ShapeDtypeStruct((S, N), x.dtype),
        grid_spec=pltpu.PrefetchScalarGridSpec(
            num_scalar_prefetch=0,
            grid=grid,
            in_specs=[
                pl.BlockSpec((rows, cols), lambda s, b: (s, b)),
                # pe block index fixed along the inner axis -> stays resident,
                # re-fetched only when the seq tile changes.
                pl.BlockSpec((rows, D), lambda s, b: (s, 0)),
            ],
            out_specs=pl.BlockSpec((rows, cols), lambda s, b: (s, b)),
        ),
        input_output_aliases={0: 0},                    # in-place add on x buffer
        compiler_params=pltpu.CompilerParams(
            dimension_semantics=("parallel", "parallel"),
            vmem_limit_bytes=32 * 1024 * 1024,
        ),
    )(x_2d, pe_2d)

    return out_2d.reshape(S, B, D)


# ---------------------------------------------------------------------------
# Self-test
# ---------------------------------------------------------------------------
if __name__ == "__main__":
    # Shapes consistent with the module: seq=8, batch=2, d_model=32
    seq_length = 8
    batch = 2
    d_model = 32
    dropout_p = 0.1  # unused at inference (identity)

    key = jax.random.PRNGKey(0)
    x = jax.random.normal(key, (seq_length, batch, d_model), dtype=jnp.float32)
    pe = make_positional_encoding_buffer(d_model, seq_length)

    out = positional_encoding_forward(x, pe)
    out = jax.block_until_ready(out)

    ref = x + pe[:seq_length]
    assert out.shape == x.shape
    assert jnp.allclose(out, ref, atol=1e-6, rtol=1e-6), "mismatch vs reference"

    # Second check: larger shape that exercises the tiled (multi-step) grid
    # and the in-kernel pe broadcast (reps > 1, partial trailing seq block).
    S2, B2, D2 = 640, 8, 256
    x2 = jax.random.normal(jax.random.PRNGKey(1), (S2, B2, D2), dtype=jnp.float32)
    pe2 = make_positional_encoding_buffer(D2, S2)
    out2 = jax.block_until_ready(positional_encoding_forward(x2, pe2))
    ref2 = x2 + pe2[:S2]
    assert jnp.allclose(out2, ref2, atol=1e-5, rtol=1e-5), "mismatch vs reference (tiled)"

    print("KERNEL_OK")
</pallas_src>

<mosaic_0001>
module attributes {stable_mosaic.version = 11 : i64} {
  func.func @_pe_add_kernel(%arg0: i32, %arg1: i32, %arg2: memref<8x64xf32, #tpu.memory_space<vmem>>, %arg3: memref<8x32xf32, #tpu.memory_space<vmem>>, %arg4: memref<8x64xf32, #tpu.memory_space<vmem>>) attributes {dimension_semantics = [#tpu.dimension_semantics<parallel>, #tpu.dimension_semantics<parallel>], iteration_bounds = array<i64: 1, 1>, scalar_prefetch = 0 : i64, scratch_operands = 0 : i64, tpu.core_type = #tpu.core_type<tc>, window_params = [{transform_indices = @transform_0, window_bounds = array<i64: 8, 64>}, {transform_indices = @transform_1, window_bounds = array<i64: 8, 32>}, {transform_indices = @transform_2, window_bounds = array<i64: 8, 64>}]} {
    %c0 = arith.constant 0 : index
    %c0_0 = arith.constant 0 : index
    %0 = vector.load %arg3[%c0, %c0_0] : memref<8x32xf32, #tpu.memory_space<vmem>>, vector<8x32xf32>
    %1 = tpu.concatenate %0, %0 in 1 : vector<8x32xf32>, vector<8x32xf32> -> vector<8x64xf32>
    %c0_1 = arith.constant 0 : index
    %c0_2 = arith.constant 0 : index
    %2 = vector.load %arg2[%c0_1, %c0_2] : memref<8x64xf32, #tpu.memory_space<vmem>>, vector<8x64xf32>
    %3 = arith.addf %2, %1 : vector<8x64xf32>
    %c0_3 = arith.constant 0 : index
    %c0_4 = arith.constant 0 : index
    %4 = vector.load %arg4[%c0_3, %c0_4] : memref<8x64xf32, #tpu.memory_space<vmem>>, vector<8x64xf32>
    tpu.vector_store %arg4[%c0_3, %c0_4], %3 {strides = array<i32>} : memref<8x64xf32, #tpu.memory_space<vmem>>, vector<8x64xf32>,
    return
  }
  func.func @transform_0(%arg0: i32, %arg1: i32) -> (i32, i32) {
    %c0_i32 = arith.constant 0 : i32
    return %arg0, %arg1 : i32, i32
  }
  func.func @transform_1(%arg0: i32, %arg1: i32) -> (i32, i32) {
    %c0_i32 = arith.constant 0 : i32
    %c0_i32_0 = arith.constant 0 : i32
    return %arg0, %c0_i32 : i32, i32
  }
  func.func @transform_2(%arg0: i32, %arg1: i32) -> (i32, i32) {
    %c0_i32 = arith.constant 0 : i32
    return %arg0, %arg1 : i32, i32
  }
}

</mosaic_0001>

<llo_original>
// kernel: tpu_custom_call.1
$region0: #{tpu_custom_call.1}
  #allocation0 [shape = 'u32[]', space=smem, size = 0x4, offset = 0x4, fixed_abs, tag = 'smem constant byte address 0x4 - core index']
  #allocation1 [shape = 'u32[72,128]{1,0:T(1,128)}', space=vmem, size = 0x9000, scoped, tag = 'internal scratch']
  %s0 = inlined_call_operand.hbm [shape: f32[8,64], index: 0, kind: input, shape index: {}, may-alias: {0,2}]
  %s1 = inlined_call_operand.vmem [shape: f32[8,32], index: 1, kind: input, shape index: {}]
  %s2 = inlined_call_operand.hbm [shape: f32[8,64], index: 2, kind: output, shape index: {}, may-alias: {0,2}]
  %s3 = sld [smem:[#allocation0]]
  $region22: #{tpu_custom_call.1} parent=0
    _
  %s5 = ssub.s32 1, %s3
  %s6 = scalar_select 0, %s5, %s3
  $region1: #{tpu_custom_call.1} parent=0
    #allocation2 [shape = 'u8[4096]{0}', space=vmem, size = 0x1000, scoped, tag = 'input window, operand 0, single buffered']
    #allocation3 [shape = 's32[1]{0}', space=sflag, size = 0x4, scoped, tag = 'scoped memory for tpu_custom_call.1']
    #allocation4 [shape = 's32[1]{0}', space=sflag, size = 0x4, scoped, tag = 'scoped memory for tpu_custom_call.1']
    #allocation5 [shape = 'u8[4096]{0}', space=vmem, size = 0x1000, scoped, tag = 'output window, operand 0, single buffered']
    %7 = vsyncpa [#allocation3], 0
    %8 = vsyncpa [#allocation4], 0
    // Predicated region
    $region2: #{tpu_custom_call.1} parent=1 // pred_check
      _
    $region3: #{tpu_custom_call.1} parent=1 // pred_check_branch
      %10 = sbr.rel (0) target = $region5
    $region4: #{tpu_custom_call.1} parent=1 // pred_region
      %12 = vsyncadd [#allocation3], 0
      %s14 = sshll.u32 %s0, 4
      %s15 = int_to_ptr.hbm [resolvable:$true] %s14
      %s16 = sshll.u32 [#allocation2], 4
      %s17 = int_to_ptr.vmem [resolvable:$true] %s16
      %19 = dma.hbm_to_vmem [thread:$0]  %s15, 128, %s17, [#allocation3]
    $region5: #{tpu_custom_call.1} parent=1 // pred_fallthru
      _
    // Predicated region
    $region6: #{tpu_custom_call.1} parent=1 // pred_check
      _
    $region7: #{tpu_custom_call.1} parent=1 // pred_check_branch
      %21 = sbr.rel (0) target = $region9
    $region8: #{tpu_custom_call.1} parent=1 // pred_region
      _
    $region9: #{tpu_custom_call.1} parent=1 // pred_fallthru
      _
    // Predicated region
    $region10: #{tpu_custom_call.1} parent=1 // pred_check
      _
    $region11: #{tpu_custom_call.1} parent=1 // pred_check_branch
      %23 = sbr.rel (0) target = $region13
    $region12: #{tpu_custom_call.1} parent=1 // pred_region
      %25 = dma.done [#allocation3], 128
    $region13: #{tpu_custom_call.1} parent=1 // pred_fallthru
      _
    %v26 = vld [vmem:[%s1] sm:$0xff]
    %28 = vrot.lane.b32.xlu0 %v26, 32
    %v29 = vpop.permute.xlu0 %28
    %vm31 = vcmask 261120
    %v32 = vsel %vm31, %v26, %v29
    %v33 = vld [vmem:[#allocation2] sm:$0xff]
    %v34 = vadd.f32 %v33, %v32
    %vm35 = vcmask 523264
    %36 = vst.msk [vmem:[#allocation5] sm:$0xff] %vm35, %v34
    // Predicated region
    $region14: #{tpu_custom_call.1} parent=1 // pred_check
      _
    $region15: #{tpu_custom_call.1} parent=1 // pred_check_branch
      %38 = sbr.rel (0) target = $region17
    $region16: #{tpu_custom_call.1} parent=1 // pred_region
      %40 = vsyncadd [#allocation4], 0
      %s42 = sshll.u32 [#allocation5], 4
      %s43 = int_to_ptr.vmem [resolvable:$true] %s42
      %s44 = sshll.u32 %s2, 4
      %s45 = int_to_ptr.hbm [resolvable:$true] %s44
      %47 = dma.vmem_to_hbm [thread:$0]  %s43, 128, %s45, [#allocation4]
    $region17: #{tpu_custom_call.1} parent=1 // pred_fallthru
      _
    // Predicated region
    $region18: #{tpu_custom_call.1} parent=1 // pred_check
      _
    $region19: #{tpu_custom_call.1} parent=1 // pred_check_branch
      %49 = sbr.rel (0) target = $region21
    $region20: #{tpu_custom_call.1} parent=1 // pred_region
      %51 = dma.done [#allocation4], 128
    $region21: #{tpu_custom_call.1} parent=1 // pred_fallthru
      _
    %52 = vsyncpa [#allocation3], 1
    %53 = vsyncpa [#allocation4], 1

</llo_original>
